<compile_context>
chip_gen: v5e
topology: v5e:2x2
jax: 0.10.0
libtpu: 0.0.40
codegen_flags: <defaults>
</compile_context>

<pallas_src>
import jax
import jax.numpy as jnp
from jax.experimental import pallas as pl
from jax.experimental.pallas import tpu as pltpu


def _round_up(x, m):
    return ((x + m - 1) // m) * m


def _cdiv(a, b):
    return -(-a // b)


def _choose_tile_b(B):
    """Pick a batch tile: 128-aligned, <=1024 rows, and >=2 grid steps whenever
    the batch is big enough to split (so v7x's two TensorCores both get work).
    Tiny batches use a single minimal tile (no over-padding)."""
    b_al = _round_up(B, 8)
    if b_al <= 256:
        return b_al
    n_steps = max(2, _cdiv(b_al, 1024))
    return min(1024, _round_up(_cdiv(b_al, n_steps), 128))


def dqn_kernel(x_ref, w1_ref, b1_ref, w2_ref, b2_ref, w3_ref, b3_ref, o_ref):
    # In-kernel cast of the input tile to the MXU compute dtype (bf16 or f32):
    # keeps the wrapper free of extra convert ops. Biases / ReLU stay f32.
    x = x_ref[...].astype(w1_ref.dtype)
    b1 = b1_ref[...]
    b2 = b2_ref[...]
    b3 = b3_ref[...]

    # layer1 + ReLU  (MXU dot, f32 accumulation)
    h1 = jnp.dot(x, w1_ref[...], preferred_element_type=jnp.float32) + b1
    h1 = jnp.maximum(h1, 0.0).astype(w2_ref.dtype)  # no-op cast in pure-f32 mode

    # layer2 + ReLU
    h2 = jnp.dot(h1, w2_ref[...], preferred_element_type=jnp.float32) + b2
    h2 = jnp.maximum(h2, 0.0).astype(w3_ref.dtype)

    # layer3 (no activation). w3/b3 columns are padded to a 128 multiple once
    # in prepare_params (lane-dense MXU matmul); only the real `action_dim`
    # columns are stored -> exact-width HBM writeback.
    q = jnp.dot(h2, w3_ref[...], preferred_element_type=jnp.float32) + b3
    o_ref[...] = q[:, : o_ref.shape[1]].astype(o_ref.dtype)


def prepare_params(params, *, use_bf16=True):
    """One-time parameter prep (do this OUTSIDE the training/inference loop):
      * cast matmul weights to bf16 (default) for the MXU fast path on all
        generations; accumulation stays f32 inside the kernel,
      * zero-pad layer-3 columns to a 128 multiple (lane-dense last matmul),
      * keep biases in f32 (v5e VPU has no bf16 adds).
    """
    compute_dtype = jnp.bfloat16 if use_bf16 else jnp.float32
    w3, b3 = params["w3"], params["b3"]
    action_dim = w3.shape[1]
    n3_pad = _round_up(max(action_dim, 128), 128)
    if n3_pad != action_dim:
        w3 = jnp.pad(w3, ((0, 0), (0, n3_pad - action_dim)))
        b3 = jnp.pad(b3, ((0, 0), (0, n3_pad - action_dim)))
    return {
        "w1": params["w1"].astype(compute_dtype),
        "b1": params["b1"].astype(jnp.float32),
        "w2": params["w2"].astype(compute_dtype),
        "b2": params["b2"].astype(jnp.float32),
        "w3": w3.astype(compute_dtype),
        "b3": b3.astype(jnp.float32),
        "action_dim": action_dim,
    }


def deep_q_network_forward(state, prepared, *, tile_b=None):
    """state: (B, state_dim) float32. prepared: output of prepare_params.

    Returns (B, action_dim) float32 Q-values.
    """
    w1, b1 = prepared["w1"], prepared["b1"]
    w2, b2 = prepared["w2"], prepared["b2"]
    w3, b3 = prepared["w3"], prepared["b3"]
    action_dim = prepared["action_dim"]

    B, state_dim = state.shape
    n1 = w1.shape[1]
    n2 = w2.shape[1]
    n3_pad = w3.shape[1]

    # ---- Batch tiling (megacore-aware; minimal padding) ----
    if tile_b is None:
        tile_b = _choose_tile_b(B)
    tile_b = max(8, min(_round_up(tile_b, 8), _round_up(B, 8)))

    b_pad = _round_up(B, tile_b)
    x_in = state
    if b_pad != B:
        x_in = jnp.pad(x_in, ((0, b_pad - B), (0, 0)))

    grid = (b_pad // tile_b,)

    # Per-step VMEM footprint at tile_b=1024 is well under 2 MiB (weights
    # ~100 KiB resident + x/out double buffers), so the default scoped VMEM
    # limit is plenty on v5e/v6e/v7x.
    out = pl.pallas_call(
        dqn_kernel,
        out_shape=jax.ShapeDtypeStruct((b_pad, action_dim), jnp.float32),
        grid_spec=pltpu.PrefetchScalarGridSpec(
            num_scalar_prefetch=0,
            grid=grid,
            in_specs=[
                pl.BlockSpec((tile_b, state_dim), lambda i: (i, 0)),  # x tile
                pl.BlockSpec((state_dim, n1), lambda i: (0, 0)),      # w1 (resident)
                pl.BlockSpec((1, n1), lambda i: (0, 0)),              # b1
                pl.BlockSpec((n1, n2), lambda i: (0, 0)),             # w2
                pl.BlockSpec((1, n2), lambda i: (0, 0)),              # b2
                pl.BlockSpec((n2, n3_pad), lambda i: (0, 0)),         # w3 (col-padded)
                pl.BlockSpec((1, n3_pad), lambda i: (0, 0)),          # b3 (col-padded)
            ],
            out_specs=pl.BlockSpec((tile_b, action_dim), lambda i: (i, 0)),
        ),
        compiler_params=pltpu.CompilerParams(
            dimension_semantics=("parallel",),  # batch axis shards across TCs on v7x
        ),
    )(x_in, w1, b1, w2, b2, w3, b3)

    # Strip batch padding only if any was added.
    return out if b_pad == B else out[:B]


def init_params(key, state_dim, action_dim, nb_node1=128, nb_node2=128):
    """Deterministic f32 init matching nn.Linear shapes (stored pre-transposed)."""
    ks = jax.random.split(key, 6)

    def linear(kw, kb, fan_in, fan_out):
        # PyTorch nn.Linear default: U(-1/sqrt(fan_in), 1/sqrt(fan_in))
        bound = 1.0 / jnp.sqrt(jnp.float32(fan_in))
        w = jax.random.uniform(kw, (fan_in, fan_out), jnp.float32, -bound, bound)
        b = jax.random.uniform(kb, (1, fan_out), jnp.float32, -bound, bound)
        return w, b

    w1, b1 = linear(ks[0], ks[1], state_dim, nb_node1)
    w2, b2 = linear(ks[2], ks[3], nb_node1, nb_node2)
    w3, b3 = linear(ks[4], ks[5], nb_node2, action_dim)
    return {"w1": w1, "b1": b1, "w2": w2, "b2": b2, "w3": w3, "b3": b3}


def reference_forward(state, params):
    h1 = jnp.maximum(state @ params["w1"] + params["b1"], 0.0)
    h2 = jnp.maximum(h1 @ params["w2"] + params["b2"], 0.0)
    return h2 @ params["w3"] + params["b3"]


if __name__ == "__main__":
    key = jax.random.PRNGKey(0)
    k_x, k_p, k_x2 = jax.random.split(key, 3)

    state_dim = 16
    action_dim = 4
    raw_params = init_params(k_p, state_dim, action_dim)

    # --- Exact-f32 path, small demo batch (single tile): strict check ---
    params_f32 = prepare_params(raw_params, use_bf16=False)
    batch = 8
    state = jax.random.normal(k_x, (batch, state_dim), jnp.float32)
    out = jax.block_until_ready(deep_q_network_forward(state, params_f32))
    ref = reference_forward(state, raw_params)
    assert out.shape == (batch, action_dim)
    assert jnp.allclose(out, ref, atol=1e-4, rtol=1e-4), "mismatch vs JAX reference (f32)"

    # --- Larger non-multiple batch: >=2 grid steps (megacore), batch padding,
    #     narrow exact-width output store ---
    batch2 = 1000
    state2 = jax.random.normal(k_x2, (batch2, state_dim), jnp.float32)
    out2 = jax.block_until_ready(deep_q_network_forward(state2, params_f32))
    ref2 = reference_forward(state2, raw_params)
    assert out2.shape == (batch2, action_dim)
    assert jnp.allclose(out2, ref2, atol=1e-4, rtol=1e-4), "mismatch vs JAX reference (f32, tiled)"

    # --- Default bf16-weight / f32-accumulate path (MXU fast path on all gens) ---
    params_bf16 = prepare_params(raw_params)  # use_bf16=True default
    out3 = jax.block_until_ready(deep_q_network_forward(state2, params_bf16))
    assert out3.shape == (batch2, action_dim)
    assert jnp.allclose(out3, ref2, atol=5e-2, rtol=5e-2), "mismatch vs JAX reference (bf16)"

    print("KERNEL_OK")
</pallas_src>

<mosaic_0001>
module attributes {stable_mosaic.version = 11 : i64} {
  func.func @dqn_kernel(%arg0: i32, %arg1: memref<8x16xf32, #tpu.memory_space<vmem>>, %arg2: memref<16x128xf32, #tpu.memory_space<vmem>>, %arg3: memref<1x128xf32, #tpu.memory_space<vmem>>, %arg4: memref<128x128xf32, #tpu.memory_space<vmem>>, %arg5: memref<1x128xf32, #tpu.memory_space<vmem>>, %arg6: memref<128x128xf32, #tpu.memory_space<vmem>>, %arg7: memref<1x128xf32, #tpu.memory_space<vmem>>, %arg8: memref<8x4xf32, #tpu.memory_space<vmem>>) attributes {dimension_semantics = [#tpu.dimension_semantics<parallel>], iteration_bounds = array<i64: 1>, scalar_prefetch = 0 : i64, scratch_operands = 0 : i64, tpu.core_type = #tpu.core_type<tc>, window_params = [{transform_indices = @transform_0, window_bounds = array<i64: 8, 16>}, {pipeline_mode = #tpu.pipeline_mode<synchronous>, transform_indices = @transform_1, window_bounds = array<i64: 16, 128>}, {pipeline_mode = #tpu.pipeline_mode<synchronous>, transform_indices = @transform_2, window_bounds = array<i64: 1, 128>}, {pipeline_mode = #tpu.pipeline_mode<synchronous>, transform_indices = @transform_3, window_bounds = array<i64: 128, 128>}, {pipeline_mode = #tpu.pipeline_mode<synchronous>, transform_indices = @transform_4, window_bounds = array<i64: 1, 128>}, {pipeline_mode = #tpu.pipeline_mode<synchronous>, transform_indices = @transform_5, window_bounds = array<i64: 128, 128>}, {pipeline_mode = #tpu.pipeline_mode<synchronous>, transform_indices = @transform_6, window_bounds = array<i64: 1, 128>}, {transform_indices = @transform_7, window_bounds = array<i64: 8, 4>}]} {
    %c0 = arith.constant 0 : index
    %c0_0 = arith.constant 0 : index
    %0 = vector.load %arg1[%c0, %c0_0] : memref<8x16xf32, #tpu.memory_space<vmem>>, vector<8x16xf32>
    %c0_1 = arith.constant 0 : index
    %c0_2 = arith.constant 0 : index
    %1 = vector.load %arg3[%c0_1, %c0_2] : memref<1x128xf32, #tpu.memory_space<vmem>>, vector<1x128xf32>
    %c0_3 = arith.constant 0 : index
    %c0_4 = arith.constant 0 : index
    %2 = vector.load %arg5[%c0_3, %c0_4] : memref<1x128xf32, #tpu.memory_space<vmem>>, vector<1x128xf32>
    %c0_5 = arith.constant 0 : index
    %c0_6 = arith.constant 0 : index
    %3 = vector.load %arg7[%c0_5, %c0_6] : memref<1x128xf32, #tpu.memory_space<vmem>>, vector<1x128xf32>
    %c0_7 = arith.constant 0 : index
    %c0_8 = arith.constant 0 : index
    %4 = vector.load %arg2[%c0_7, %c0_8] : memref<16x128xf32, #tpu.memory_space<vmem>>, vector<16x128xf32>
    %cst = arith.constant dense<0.000000e+00> : vector<8x128xf32>
    %5 = tpu.matmul %0, %4, %cst {dimension_numbers = #tpu.dot_dimension_numbers<[1], [0], [0], [1], [0, 0, 1, 1], [], []>} : vector<8x16xf32>, vector<16x128xf32>, vector<8x128xf32> -> vector<8x128xf32>
    %6 = vector.broadcast %1 : vector<1x128xf32> to vector<8x128xf32>
    %7 = arith.addf %5, %6 : vector<8x128xf32>
    %cst_9 = arith.constant 0.000000e+00 : f32
    %8 = vector.broadcast %cst_9 : f32 to vector<8x128xf32>
    %9 = arith.maximumf %7, %8 : vector<8x128xf32>
    %c0_10 = arith.constant 0 : index
    %c0_11 = arith.constant 0 : index
    %10 = vector.load %arg4[%c0_10, %c0_11] : memref<128x128xf32, #tpu.memory_space<vmem>>, vector<128x128xf32>
    %cst_12 = arith.constant dense<0.000000e+00> : vector<8x128xf32>
    %11 = tpu.matmul %9, %10, %cst_12 {dimension_numbers = #tpu.dot_dimension_numbers<[1], [0], [0], [1], [0, 0, 1, 1], [], []>} : vector<8x128xf32>, vector<128x128xf32>, vector<8x128xf32> -> vector<8x128xf32>
    %12 = vector.broadcast %2 : vector<1x128xf32> to vector<8x128xf32>
    %13 = arith.addf %11, %12 : vector<8x128xf32>
    %cst_13 = arith.constant 0.000000e+00 : f32
    %14 = vector.broadcast %cst_13 : f32 to vector<8x128xf32>
    %15 = arith.maximumf %13, %14 : vector<8x128xf32>
    %c0_14 = arith.constant 0 : index
    %c0_15 = arith.constant 0 : index
    %16 = vector.load %arg6[%c0_14, %c0_15] : memref<128x128xf32, #tpu.memory_space<vmem>>, vector<128x128xf32>
    %cst_16 = arith.constant dense<0.000000e+00> : vector<8x128xf32>
    %17 = tpu.matmul %15, %16, %cst_16 {dimension_numbers = #tpu.dot_dimension_numbers<[1], [0], [0], [1], [0, 0, 1, 1], [], []>} : vector<8x128xf32>, vector<128x128xf32>, vector<8x128xf32> -> vector<8x128xf32>
    %18 = vector.broadcast %3 : vector<1x128xf32> to vector<8x128xf32>
    %19 = arith.addf %17, %18 : vector<8x128xf32>
    %20 = vector.extract_strided_slice %19 {offsets = [0, 0], sizes = [8, 4], strides = [1, 1]} : vector<8x128xf32> to vector<8x4xf32>
    %c0_17 = arith.constant 0 : index
    %c0_18 = arith.constant 0 : index
    %21 = vector.load %arg8[%c0_17, %c0_18] : memref<8x4xf32, #tpu.memory_space<vmem>>, vector<8x4xf32>
    tpu.vector_store %arg8[%c0_17, %c0_18], %20 {strides = array<i32>} : memref<8x4xf32, #tpu.memory_space<vmem>>, vector<8x4xf32>,
    return
  }
  func.func @transform_0(%arg0: i32) -> (i32, i32) {
    %c0_i32 = arith.constant 0 : i32
    %c0_i32_0 = arith.constant 0 : i32
    return %arg0, %c0_i32 : i32, i32
  }
  func.func @transform_1(%arg0: i32) -> (i32, i32) {
    %c0_i32 = arith.constant 0 : i32
    %c0_i32_0 = arith.constant 0 : i32
    %c0_i32_1 = arith.constant 0 : i32
    return %c0_i32, %c0_i32_0 : i32, i32
  }
  func.func @transform_2(%arg0: i32) -> (i32, i32) {
    %c0_i32 = arith.constant 0 : i32
    %c0_i32_0 = arith.constant 0 : i32
    %c0_i32_1 = arith.constant 0 : i32
    return %c0_i32, %c0_i32_0 : i32, i32
  }
  func.func @transform_3(%arg0: i32) -> (i32, i32) {
    %c0_i32 = arith.constant 0 : i32
    %c0_i32_0 = arith.constant 0 : i32
    %c0_i32_1 = arith.constant 0 : i32
    return %c0_i32, %c0_i32_0 : i32, i32
  }
  func.func @transform_4(%arg0: i32) -> (i32, i32) {
    %c0_i32 = arith.constant 0 : i32
    %c0_i32_0 = arith.constant 0 : i32
    %c0_i32_1 = arith.constant 0 : i32
    return %c0_i32, %c0_i32_0 : i32, i32
  }
  func.func @transform_5(%arg0: i32) -> (i32, i32) {
    %c0_i32 = arith.constant 0 : i32
    %c0_i32_0 = arith.constant 0 : i32
    %c0_i32_1 = arith.constant 0 : i32
    return %c0_i32, %c0_i32_0 : i32, i32
  }
  func.func @transform_6(%arg0: i32) -> (i32, i32) {
    %c0_i32 = arith.constant 0 : i32
    %c0_i32_0 = arith.constant 0 : i32
    %c0_i32_1 = arith.constant 0 : i32
    return %c0_i32, %c0_i32_0 : i32, i32
  }
  func.func @transform_7(%arg0: i32) -> (i32, i32) {
    %c0_i32 = arith.constant 0 : i32
    %c0_i32_0 = arith.constant 0 : i32
    return %arg0, %c0_i32 : i32, i32
  }
}

</mosaic_0001>

<llo_original>
// kernel: tpu_custom_call.1
$region0: #{tpu_custom_call.1}
  #allocation0 [shape = 'u32[]', space=smem, size = 0x4, offset = 0x4, fixed_abs, tag = 'smem constant byte address 0x4 - core index']
  #allocation1 [shape = 'u32[72,128]{1,0:T(1,128)}', space=vmem, size = 0x9000, scoped, tag = 'internal scratch']
  %s0 = inlined_call_operand.hbm [shape: f32[8,16], index: 0, kind: input, shape index: {}]
  %s1 = inlined_call_operand.hbm [shape: f32[16,128], index: 1, kind: input, shape index: {}]
  %s2 = inlined_call_operand.vmem [shape: f32[1,128], index: 2, kind: input, shape index: {}]
  %s3 = inlined_call_operand.hbm [shape: f32[128,128], index: 3, kind: input, shape index: {}]
  %s4 = inlined_call_operand.vmem [shape: f32[1,128], index: 4, kind: input, shape index: {}]
  %s5 = inlined_call_operand.hbm [shape: f32[128,128], index: 5, kind: input, shape index: {}]
  %s6 = inlined_call_operand.vmem [shape: f32[1,128], index: 6, kind: input, shape index: {}]
  %s7 = inlined_call_operand.vmem [shape: f32[8,4], index: 7, kind: output, shape index: {}]
  %s8 = sld [smem:[#allocation0]]
  $region54: #{tpu_custom_call.1} parent=0
    _
  %s10 = ssub.s32 1, %s8
  %s11 = scalar_select 0, %s10, %s8
  $region1: #{tpu_custom_call.1} parent=0
    #allocation2 [shape = 'u8[4096]{0}', space=vmem, size = 0x1000, scoped, tag = 'input window, operand 0, single buffered']
    #allocation3 [shape = 's32[1]{0}', space=sflag, size = 0x4, scoped, tag = 'scoped memory for tpu_custom_call.1']
    #allocation4 [shape = 'u8[8192]{0}', space=vmem, size = 0x2000, scoped, tag = 'input window, operand 1, single buffered']
    #allocation5 [shape = 's32[1]{0}', space=sflag, size = 0x4, scoped, tag = 'scoped memory for tpu_custom_call.1']
    #allocation6 [shape = 'u8[65536]{0}', space=vmem, size = 0x10000, scoped, tag = 'input window, operand 3, single buffered']
    #allocation7 [shape = 'u8[65536]{0}', space=vmem, size = 0x10000, scoped, tag = 'input window, operand 5, single buffered']
    #allocation8 [shape = 's32[1]{0}', space=sflag, size = 0x4, scoped, tag = 'scoped memory for tpu_custom_call.1']
    %12 = vsyncpa [#allocation3], 0
    %13 = vsyncpa [#allocation5], 0
    %14 = vsyncpa [#allocation8], 0
    // Predicated region
    $region2: #{tpu_custom_call.1} parent=1 // pred_check
      _
    $region3: #{tpu_custom_call.1} parent=1 // pred_check_branch
      %16 = sbr.rel (0) target = $region5
    $region4: #{tpu_custom_call.1} parent=1 // pred_region
      %18 = vsyncadd [#allocation3], 0
      %s20 = sshll.u32 %s0, 4
      %s21 = int_to_ptr.hbm [resolvable:$true] %s20
      %s22 = sshll.u32 [#allocation2], 4
      %s23 = int_to_ptr.vmem [resolvable:$true] %s22
      %25 = dma.hbm_to_vmem [thread:$0]  %s21, 128, %s23, [#allocation3]
    $region5: #{tpu_custom_call.1} parent=1 // pred_fallthru
      _
    // Predicated region
    $region6: #{tpu_custom_call.1} parent=1 // pred_check
      _
    $region7: #{tpu_custom_call.1} parent=1 // pred_check_branch
      %27 = sbr.rel (0) target = $region9
    $region8: #{tpu_custom_call.1} parent=1 // pred_region
      %29 = vsyncadd [#allocation5], 0
      %s30 = sshll.u32 %s1, 4
      %s31 = int_to_ptr.hbm [resolvable:$true] %s30
      %s32 = sshll.u32 [#allocation4], 4
      %s33 = int_to_ptr.vmem [resolvable:$true] %s32
      %38 = dma.hbm_to_vmem [thread:$0]  %s31, 256, %s33, [#allocation5], 128, 128, 8
    $region9: #{tpu_custom_call.1} parent=1 // pred_fallthru
      _
    // Predicated region
    $region10: #{tpu_custom_call.1} parent=1 // pred_check
      _
    $region11: #{tpu_custom_call.1} parent=1 // pred_check_branch
      %40 = sbr.rel (0) target = $region13
    $region12: #{tpu_custom_call.1} parent=1 // pred_region
      _
    $region13: #{tpu_custom_call.1} parent=1 // pred_fallthru
      _
    // Predicated region
    $region14: #{tpu_custom_call.1} parent=1 // pred_check
      _
    $region15: #{tpu_custom_call.1} parent=1 // pred_check_branch
      %42 = sbr.rel (0) target = $region17
    $region16: #{tpu_custom_call.1} parent=1 // pred_region
      %44 = vsyncadd [#allocation5], 0
      %s45 = sshll.u32 %s3, 4
      %s46 = int_to_ptr.hbm [resolvable:$true] %s45
      %s47 = sshll.u32 [#allocation6], 4
      %s48 = int_to_ptr.vmem [resolvable:$true] %s47
      %53 = dma.hbm_to_vmem [thread:$0]  %s46, 2048, %s48, [#allocation5], 128, 128, 8
    $region17: #{tpu_custom_call.1} parent=1 // pred_fallthru
      _
    // Predicated region
    $region18: #{tpu_custom_call.1} parent=1 // pred_check
      _
    $region19: #{tpu_custom_call.1} parent=1 // pred_check_branch
      %55 = sbr.rel (0) target = $region21
    $region20: #{tpu_custom_call.1} parent=1 // pred_region
      _
    $region21: #{tpu_custom_call.1} parent=1 // pred_fallthru
      _
    // Predicated region
    $region22: #{tpu_custom_call.1} parent=1 // pred_check
      _
    $region23: #{tpu_custom_call.1} parent=1 // pred_check_branch
      %57 = sbr.rel (0) target = $region25
    $region24: #{tpu_custom_call.1} parent=1 // pred_region
      %59 = vsyncadd [#allocation8], 0
      %s60 = sshll.u32 %s5, 4
      %s61 = int_to_ptr.hbm [resolvable:$true] %s60
      %s62 = sshll.u32 [#allocation7], 4
      %s63 = int_to_ptr.vmem [resolvable:$true] %s62
      %68 = dma.hbm_to_vmem [thread:$0]  %s61, 2048, %s63, [#allocation8], 128, 128, 8
    $region25: #{tpu_custom_call.1} parent=1 // pred_fallthru
      _
    // Predicated region
    $region26: #{tpu_custom_call.1} parent=1 // pred_check
      _
    $region27: #{tpu_custom_call.1} parent=1 // pred_check_branch
      %70 = sbr.rel (0) target = $region29
    $region28: #{tpu_custom_call.1} parent=1 // pred_region
      _
    $region29: #{tpu_custom_call.1} parent=1 // pred_fallthru
      _
    // Predicated region
    $region30: #{tpu_custom_call.1} parent=1 // pred_check
      _
    $region31: #{tpu_custom_call.1} parent=1 // pred_check_branch
      %72 = sbr.rel (0) target = $region33
    $region32: #{tpu_custom_call.1} parent=1 // pred_region
      %74 = dma.done [#allocation3], 128
    $region33: #{tpu_custom_call.1} parent=1 // pred_fallthru
      _
    // Predicated region
    $region34: #{tpu_custom_call.1} parent=1 // pred_check
      _
    $region35: #{tpu_custom_call.1} parent=1 // pred_check_branch
      %76 = sbr.rel (0) target = $region37
    $region36: #{tpu_custom_call.1} parent=1 // pred_region
      %78 = dma.done [#allocation5], 256
    $region37: #{tpu_custom_call.1} parent=1 // pred_fallthru
      _
    // Predicated region
    $region38: #{tpu_custom_call.1} parent=1 // pred_check
      _
    $region39: #{tpu_custom_call.1} parent=1 // pred_check_branch
      %80 = sbr.rel (0) target = $region41
    $region40: #{tpu_custom_call.1} parent=1 // pred_region
      %82 = dma.done [#allocation5], 2048
    $region41: #{tpu_custom_call.1} parent=1 // pred_fallthru
      _
    // Predicated region
    $region42: #{tpu_custom_call.1} parent=1 // pred_check
      _
    $region43: #{tpu_custom_call.1} parent=1 // pred_check_branch
      %84 = sbr.rel (0) target = $region45
    $region44: #{tpu_custom_call.1} parent=1 // pred_region
      %86 = dma.done [#allocation8], 2048
    $region45: #{tpu_custom_call.1} parent=1 // pred_fallthru
      _
    %v87 = vld [vmem:[#allocation2] sm:$0xff]
    %v88 = vld [vmem:[%s2] sm:$0x1]
    %v89 = vld [vmem:[%s4] sm:$0x1]
    %v90 = vld [vmem:[%s6] sm:$0x1]
    %v91 = vld [vmem:[#allocation4] sm:$0xff]
    %v92 = vld [vmem:[#allocation4 + $0x8] sm:$0xff]
    %v94 = vperm.slane %v88, 0
    %vm96 = vcmask 130048
    %v98 = vsel %vm96, %v87, 0
    %100 = vmatpush.msra.mxu0 0.0
    %101 = vmatpush.msra.mxu0 0.0
    %102 = vmatpush.msra.mxu0 0.0
    %103 = vmatpush.msra.mxu0 0.0
    %104 = vmatpush.msra.mxu0 0.0
    %105 = vmatpush.msra.mxu0 0.0
    %106 = vmatpush.msra.mxu0 0.0
    %107 = vmatpush.msra.mxu0 0.0
    %108 = vmatpush.msra.mxu0 0.0
    %109 = vmatpush.msra.mxu0 0.0
    %110 = vmatpush.msra.mxu0 0.0
    %111 = vmatpush.msra.mxu0 0.0
    %112 = vmatpush.msra.mxu0 0.0
    %113 = vmatpush.msra.mxu0 0.0
    %114 = vmatpush.msra.mxu0 %v92
    %115 = vmatpush.msra.mxu0 %v91
    %116 = vmatmul.f32.gmra.mxu0 %v98
    %v117 = vpop.f32.mrf.mxu0
    %v118 = vadd.f32 %v94, %v117
    %119 = vdwg.mxu0
    %v120 = vmax.f32 %v118, 0.0
    %v121 = vld [vmem:[#allocation6] sm:$0xff]
    %v122 = vld [vmem:[#allocation6 + $0x8] sm:$0xff]
    %v123 = vld [vmem:[#allocation6 + $0x10] sm:$0xff]
    %v124 = vld [vmem:[#allocation6 + $0x18] sm:$0xff]
    %v125 = vld [vmem:[#allocation6 + $0x20] sm:$0xff]
    %v126 = vld [vmem:[#allocation6 + $0x28] sm:$0xff]
    %v127 = vld [vmem:[#allocation6 + $0x30] sm:$0xff]
    %v128 = vld [vmem:[#allocation6 + $0x38] sm:$0xff]
    %v129 = vld [vmem:[#allocation6 + $0x40] sm:$0xff]
    %v130 = vld [vmem:[#allocation6 + $0x48] sm:$0xff]
    %v131 = vld [vmem:[#allocation6 + $0x50] sm:$0xff]
    %v132 = vld [vmem:[#allocation6 + $0x58] sm:$0xff]
    %v133 = vld [vmem:[#allocation6 + $0x60] sm:$0xff]
    %v134 = vld [vmem:[#allocation6 + $0x68] sm:$0xff]
    %v135 = vld [vmem:[#allocation6 + $0x70] sm:$0xff]
    %v136 = vld [vmem:[#allocation6 + $0x78] sm:$0xff]
    %v138 = vperm.slane %v89, 0
    %140 = vmatpush.msra.mxu0 %v136
    %141 = vmatpush.msra.mxu0 %v135
    %142 = vmatpush.msra.mxu0 %v134
    %143 = vmatpush.msra.mxu0 %v133
    %144 = vmatpush.msra.mxu0 %v132
    %145 = vmatpush.msra.mxu0 %v131
    %146 = vmatpush.msra.mxu0 %v130
    %147 = vmatpush.msra.mxu0 %v129
    %148 = vmatpush.msra.mxu0 %v128
    %149 = vmatpush.msra.mxu0 %v127
    %150 = vmatpush.msra.mxu0 %v126
    %151 = vmatpush.msra.mxu0 %v125
    %152 = vmatpush.msra.mxu0 %v124
    %153 = vmatpush.msra.mxu0 %v123
    %154 = vmatpush.msra.mxu0 %v122
    %155 = vmatpush.msra.mxu0 %v121
    %156 = vmatmul.f32.gmra.mxu0 %v120
    %v157 = vpop.f32.mrf.mxu0
    %v158 = vadd.f32 %v138, %v157
    %159 = vdwg.mxu0
    %v160 = vmax.f32 %v158, 0.0
    %v161 = vld [vmem:[#allocation7] sm:$0xff]
    %v162 = vld [vmem:[#allocation7 + $0x8] sm:$0xff]
    %v163 = vld [vmem:[#allocation7 + $0x10] sm:$0xff]
    %v164 = vld [vmem:[#allocation7 + $0x18] sm:$0xff]
    %v165 = vld [vmem:[#allocation7 + $0x20] sm:$0xff]
    %v166 = vld [vmem:[#allocation7 + $0x28] sm:$0xff]
    %v167 = vld [vmem:[#allocation7 + $0x30] sm:$0xff]
    %v168 = vld [vmem:[#allocation7 + $0x38] sm:$0xff]
    %v169 = vld [vmem:[#allocation7 + $0x40] sm:$0xff]
    %v170 = vld [vmem:[#allocation7 + $0x48] sm:$0xff]
    %v171 = vld [vmem:[#allocation7 + $0x50] sm:$0xff]
    %v172 = vld [vmem:[#allocation7 + $0x58] sm:$0xff]
    %v173 = vld [vmem:[#allocation7 + $0x60] sm:$0xff]
    %v174 = vld [vmem:[#allocation7 + $0x68] sm:$0xff]
    %v175 = vld [vmem:[#allocation7 + $0x70] sm:$0xff]
    %v176 = vld [vmem:[#allocation7 + $0x78] sm:$0xff]
    %v178 = vperm.slane %v90, 0
    %180 = vmatpush.msra.mxu0 %v176
    %181 = vmatpush.msra.mxu0 %v175
    %182 = vmatpush.msra.mxu0 %v174
    %183 = vmatpush.msra.mxu0 %v173
    %184 = vmatpush.msra.mxu0 %v172
    %185 = vmatpush.msra.mxu0 %v171
    %186 = vmatpush.msra.mxu0 %v170
    %187 = vmatpush.msra.mxu0 %v169
    %188 = vmatpush.msra.mxu0 %v168
    %189 = vmatpush.msra.mxu0 %v167
    %190 = vmatpush.msra.mxu0 %v166
    %191 = vmatpush.msra.mxu0 %v165
    %192 = vmatpush.msra.mxu0 %v164
    %193 = vmatpush.msra.mxu0 %v163
    %194 = vmatpush.msra.mxu0 %v162
    %195 = vmatpush.msra.mxu0 %v161
    %196 = vmatmul.f32.gmra.mxu0 %v160
    %v197 = vpop.f32.mrf.mxu0
    %v198 = vadd.f32 %v178, %v197
    %199 = vdwg.mxu0
    %vm200 = vcmask 31744
    %201 = vst.msk [vmem:[%s7] sm:$0xff] %vm200, %v198
    // Predicated region
    $region46: #{tpu_custom_call.1} parent=1 // pred_check
      _
    $region47: #{tpu_custom_call.1} parent=1 // pred_check_branch
      %203 = sbr.rel (0) target = $region49
    $region48: #{tpu_custom_call.1} parent=1 // pred_region
      _
    $region49: #{tpu_custom_call.1} parent=1 // pred_fallthru
      _
    // Predicated region
    $region50: #{tpu_custom_call.1} parent=1 // pred_check
      _
    $region51: #{tpu_custom_call.1} parent=1 // pred_check_branch
      %205 = sbr.rel (0) target = $region53
    $region52: #{tpu_custom_call.1} parent=1 // pred_region
      _
    $region53: #{tpu_custom_call.1} parent=1 // pred_fallthru
      _
    %206 = vsyncpa [#allocation3], 1
    %207 = vsyncpa [#allocation5], 1
    %208 = vsyncpa [#allocation8], 1

</llo_original>
